<compile_context>
chip_gen: v5e
topology: v5e:2x2
jax: 0.10.0
libtpu: 0.0.40
codegen_flags: <defaults>
</compile_context>

<pallas_src>
import functools

import jax
import jax.numpy as jnp
from jax.experimental import pallas as pl
from jax.experimental.pallas import tpu as pltpu


def _round_up(x, m):
    return (x + m - 1) // m * m


def _actor_critic_kernel(obs_ref,
                         w1_ref, b1_ref, w2_ref, b2_ref,
                         wv_ref, bv_ref,
                         v_ref, ha_ref, *, hp):
    """One batch tile: fused critic+actor 2-layer tanh MLP + value head."""
    obs = obs_ref[...]                                            # [TB, obs_dim]

    # Fused layer 1: critic half in lanes [0, hp), actor half in [hp, 2*hp).
    h1 = jnp.tanh(
        jnp.dot(obs, w1_ref[...], preferred_element_type=jnp.float32)
        + b1_ref[...])                                            # [TB, 2*hp]

    # Fused layer 2: block-diagonal weights keep the branches independent.
    h2 = jnp.tanh(
        jnp.dot(h1, w2_ref[...], preferred_element_type=jnp.float32)
        + b2_ref[...])                                            # [TB, 2*hp]

    # Value head: VPU multiply + XLU cross-lane reduce instead of an N=1 MXU
    # matmul (wv_ref is a [1, 2*hp] row, nonzero only on critic lanes).
    v = jnp.sum(h2 * wv_ref[...], axis=-1, keepdims=True)         # [TB, 1]
    # Lane-dense store: bv_ref is [1, 128], broadcast fills the 128-lane block.
    v_ref[...] = v + bv_ref[...]                                  # [TB, 128]

    # hidden_actor = actor half of the fused hidden (lane-aligned slice).
    ha_ref[...] = h2[:, hp:]                                      # [TB, hp]


@functools.partial(jax.jit, static_argnames=("hid_dim", "batch_tile"))
def actor_critic_forward(obs, packed, hid_dim, batch_tile=512):
    """Runs ActorCritic.forward in a single gridded Pallas kernel.

    obs:    [B, obs_dim] float32
    packed: dict from pack_params() (fused + lane-padded weights)
    returns (V [B, 1], hidden_actor [B, hid_dim])
    """
    B, obs_dim = obs.shape
    hp = packed["w1"].shape[1] // 2          # hid_dim padded to 128-lane multiple

    # Batch tile: multiple of 8 sublanes, capped so double-buffered tiles plus
    # resident weights stay well inside v7x's 64 MiB VMEM / 32 MiB scoped limit.
    tb = min(batch_tile, _round_up(B, 8))
    b_pad = _round_up(B, tb)
    if b_pad != B:
        obs = jnp.pad(obs, ((0, b_pad - B), (0, 0)))
    grid = (b_pad // tb,)

    tiled = lambda i: (i, 0)        # batch-tiled arrays
    resident = lambda i: (0, 0)     # weights/biases: same block every step -> stay in VMEM

    flops = 2 * b_pad * (obs_dim * 2 * hp + (2 * hp) * (2 * hp)) + 2 * b_pad * 2 * hp
    bytes_accessed = 4 * (obs.size
                          + sum(int(v.size) for v in packed.values())
                          + b_pad * 128 + b_pad * hp)
    cost = pl.CostEstimate(flops=flops,
                           transcendentals=2 * b_pad * 2 * hp,
                           bytes_accessed=bytes_accessed)

    kernel = functools.partial(_actor_critic_kernel, hp=hp)

    v_full, ha_full = pl.pallas_call(
        kernel,
        out_shape=(
            jax.ShapeDtypeStruct((b_pad, 128), jnp.float32),   # lane-dense V slab
            jax.ShapeDtypeStruct((b_pad, hp), jnp.float32),    # padded hidden_actor
        ),
        grid=grid,
        in_specs=[
            pl.BlockSpec((tb, obs_dim), tiled),        # obs
            pl.BlockSpec((obs_dim, 2 * hp), resident),  # fused W1
            pl.BlockSpec((1, 2 * hp), resident),        # fused b1
            pl.BlockSpec((2 * hp, 2 * hp), resident),   # block-diag W2
            pl.BlockSpec((1, 2 * hp), resident),        # fused b2
            pl.BlockSpec((1, 2 * hp), resident),        # value-head row
            pl.BlockSpec((1, 128), resident),           # value bias (lane-dense)
        ],
        out_specs=(
            pl.BlockSpec((tb, 128), tiled),
            pl.BlockSpec((tb, hp), tiled),
        ),
        compiler_params=pltpu.CompilerParams(
            dimension_semantics=("parallel",),          # shard batch tiles across TCs (v7x)
            vmem_limit_bytes=32 * 1024 * 1024,          # fits v5e/v6e/v7x scoped VMEM
        ),
        cost_estimate=cost,
    )(obs, packed["w1"], packed["b1"], packed["w2"], packed["b2"],
      packed["wv"], packed["bv"])

    return v_full[:B, :1], ha_full[:B, :hid_dim]


def init_params(key, obs_dim, hid_dim):
    """Deterministic orthogonal init (gain=sqrt(2)), zero biases.

    Matches ActorCritic(initialize_weight=True). Weights are stored
    [in_features, out_features] (transpose of torch's nn.Linear layout).
    """
    gain = jnp.sqrt(2.0)
    ortho = jax.nn.initializers.orthogonal(scale=gain)
    keys = jax.random.split(key, 5)

    def linear_w(k, n_in, n_out):
        # torch initializes orthogonal on the (out, in) matrix; transpose to (in, out).
        w_torch = ortho(k, (n_out, n_in), jnp.float32)
        return jnp.transpose(w_torch)

    return {
        # critic
        "w1c": linear_w(keys[0], obs_dim, hid_dim),
        "b1c": jnp.zeros((1, hid_dim), jnp.float32),
        "w2c": linear_w(keys[1], hid_dim, hid_dim),
        "b2c": jnp.zeros((1, hid_dim), jnp.float32),
        # critic_linear (hid -> 1)
        "wv": linear_w(keys[2], hid_dim, 1),
        "bv": jnp.zeros((1, 1), jnp.float32),
        # actor
        "w1a": linear_w(keys[3], obs_dim, hid_dim),
        "b1a": jnp.zeros((1, hid_dim), jnp.float32),
        "w2a": linear_w(keys[4], hid_dim, hid_dim),
        "b2a": jnp.zeros((1, hid_dim), jnp.float32),
    }


def pack_params(params, hid_dim):
    """Fuse actor/critic layers and pad hidden dims to 128-lane multiples.

    Layout of the fused hidden dimension (width 2*HP):
      lanes [0, hid)        : critic hidden
      lanes [hid, HP)       : zero padding
      lanes [HP, HP+hid)    : actor hidden
      lanes [HP+hid, 2*HP)  : zero padding
    Zero-padded weight rows/columns keep padded lanes exactly 0 through tanh,
    so the fused network is bit-compatible with the unfused reference.
    """
    hp = _round_up(hid_dim, 128)
    obs_dim = params["w1c"].shape[0]

    def pad_to(a, rows, cols):
        return jnp.pad(a, ((0, rows - a.shape[0]), (0, cols - a.shape[1])))

    # Layer 1: [obs_dim, 2*HP] = [critic | actor]
    w1 = jnp.concatenate([pad_to(params["w1c"], obs_dim, hp),
                          pad_to(params["w1a"], obs_dim, hp)], axis=1)
    b1 = jnp.concatenate([pad_to(params["b1c"], 1, hp),
                          pad_to(params["b1a"], 1, hp)], axis=1)

    # Layer 2: block-diagonal [2*HP, 2*HP]
    w2c_p = pad_to(params["w2c"], hp, hp)
    w2a_p = pad_to(params["w2a"], hp, hp)
    zeros = jnp.zeros((hp, hp), jnp.float32)
    w2 = jnp.concatenate(
        [jnp.concatenate([w2c_p, zeros], axis=1),
         jnp.concatenate([zeros, w2a_p], axis=1)], axis=0)
    b2 = jnp.concatenate([pad_to(params["b2c"], 1, hp),
                          pad_to(params["b2a"], 1, hp)], axis=1)

    # Value head as a broadcast row over the fused hidden (critic lanes only),
    # bias replicated to a lane-dense [1, 128] row.
    wv_row = jnp.pad(jnp.transpose(params["wv"]), ((0, 0), (0, 2 * hp - hid_dim)))
    bv_row = jnp.broadcast_to(params["bv"], (1, 128)).astype(jnp.float32)

    return {"w1": w1, "b1": b1, "w2": w2, "b2": b2, "wv": wv_row, "bv": bv_row}


def _reference_forward(obs, p):
    hc = jnp.tanh(obs @ p["w1c"] + p["b1c"])
    hc = jnp.tanh(hc @ p["w2c"] + p["b2c"])
    v = hc @ p["wv"] + p["bv"]
    ha = jnp.tanh(obs @ p["w1a"] + p["b1a"])
    ha = jnp.tanh(ha @ p["w2a"] + p["b2a"])
    return v, ha


if __name__ == "__main__":
    B, obs_dim, hid_dim = 8, 16, 32

    key = jax.random.PRNGKey(0)
    k_obs, k_params = jax.random.split(key)
    obs = jax.random.normal(k_obs, (B, obs_dim), dtype=jnp.float32)
    params = init_params(k_params, obs_dim, hid_dim)
    packed = pack_params(params, hid_dim)

    v, hidden_actor = actor_critic_forward(obs, packed, hid_dim=hid_dim,
                                           batch_tile=512)
    jax.block_until_ready((v, hidden_actor))

    # correctness check against plain-JAX reference
    v_ref, ha_ref = _reference_forward(obs, params)
    assert v.shape == (B, 1) and hidden_actor.shape == (B, hid_dim)
    assert jnp.allclose(v, v_ref, atol=1e-5, rtol=1e-5)
    assert jnp.allclose(hidden_actor, ha_ref, atol=1e-5, rtol=1e-5)

    print("KERNEL_OK")
</pallas_src>

<mosaic_0001>
module attributes {stable_mosaic.version = 11 : i64} {
  func.func @_actor_critic_kernel(%arg0: i32, %arg1: memref<8x16xf32, #tpu.memory_space<vmem>>, %arg2: memref<16x256xf32, #tpu.memory_space<vmem>>, %arg3: memref<1x256xf32, #tpu.memory_space<vmem>>, %arg4: memref<256x256xf32, #tpu.memory_space<vmem>>, %arg5: memref<1x256xf32, #tpu.memory_space<vmem>>, %arg6: memref<1x256xf32, #tpu.memory_space<vmem>>, %arg7: memref<1x128xf32, #tpu.memory_space<vmem>>, %arg8: memref<8x128xf32, #tpu.memory_space<vmem>>, %arg9: memref<8x128xf32, #tpu.memory_space<vmem>>) attributes {dimension_semantics = [#tpu.dimension_semantics<parallel>], iteration_bounds = array<i64: 1>, scalar_prefetch = 0 : i64, scratch_operands = 0 : i64, tpu.core_type = #tpu.core_type<tc>, window_params = [{transform_indices = @transform_0, window_bounds = array<i64: 8, 16>}, {pipeline_mode = #tpu.pipeline_mode<synchronous>, transform_indices = @transform_1, window_bounds = array<i64: 16, 256>}, {pipeline_mode = #tpu.pipeline_mode<synchronous>, transform_indices = @transform_2, window_bounds = array<i64: 1, 256>}, {pipeline_mode = #tpu.pipeline_mode<synchronous>, transform_indices = @transform_3, window_bounds = array<i64: 256, 256>}, {pipeline_mode = #tpu.pipeline_mode<synchronous>, transform_indices = @transform_4, window_bounds = array<i64: 1, 256>}, {pipeline_mode = #tpu.pipeline_mode<synchronous>, transform_indices = @transform_5, window_bounds = array<i64: 1, 256>}, {pipeline_mode = #tpu.pipeline_mode<synchronous>, transform_indices = @transform_6, window_bounds = array<i64: 1, 128>}, {transform_indices = @transform_7, window_bounds = array<i64: 8, 128>}, {transform_indices = @transform_8, window_bounds = array<i64: 8, 128>}]} {
    %c0 = arith.constant 0 : index
    %c0_0 = arith.constant 0 : index
    %0 = vector.load %arg1[%c0, %c0_0] : memref<8x16xf32, #tpu.memory_space<vmem>>, vector<8x16xf32>
    %c0_1 = arith.constant 0 : index
    %c0_2 = arith.constant 0 : index
    %1 = vector.load %arg2[%c0_1, %c0_2] : memref<16x256xf32, #tpu.memory_space<vmem>>, vector<16x256xf32>
    %cst = arith.constant dense<0.000000e+00> : vector<8x256xf32>
    %2 = tpu.matmul %0, %1, %cst {dimension_numbers = #tpu.dot_dimension_numbers<[1], [0], [0], [1], [0, 0, 1, 1], [], []>} : vector<8x16xf32>, vector<16x256xf32>, vector<8x256xf32> -> vector<8x256xf32>
    %c0_3 = arith.constant 0 : index
    %c0_4 = arith.constant 0 : index
    %3 = vector.load %arg3[%c0_3, %c0_4] : memref<1x256xf32, #tpu.memory_space<vmem>>, vector<1x256xf32>
    %4 = vector.broadcast %3 : vector<1x256xf32> to vector<8x256xf32>
    %5 = arith.addf %2, %4 : vector<8x256xf32>
    %6 = math.tanh %5 : vector<8x256xf32>
    %c0_5 = arith.constant 0 : index
    %c0_6 = arith.constant 0 : index
    %7 = vector.load %arg4[%c0_5, %c0_6] : memref<256x256xf32, #tpu.memory_space<vmem>>, vector<256x256xf32>
    %cst_7 = arith.constant dense<0.000000e+00> : vector<8x256xf32>
    %8 = tpu.matmul %6, %7, %cst_7 {dimension_numbers = #tpu.dot_dimension_numbers<[1], [0], [0], [1], [0, 0, 1, 1], [], []>} : vector<8x256xf32>, vector<256x256xf32>, vector<8x256xf32> -> vector<8x256xf32>
    %c0_8 = arith.constant 0 : index
    %c0_9 = arith.constant 0 : index
    %9 = vector.load %arg5[%c0_8, %c0_9] : memref<1x256xf32, #tpu.memory_space<vmem>>, vector<1x256xf32>
    %10 = vector.broadcast %9 : vector<1x256xf32> to vector<8x256xf32>
    %11 = arith.addf %8, %10 : vector<8x256xf32>
    %12 = math.tanh %11 : vector<8x256xf32>
    %c0_10 = arith.constant 0 : index
    %c0_11 = arith.constant 0 : index
    %13 = vector.load %arg6[%c0_10, %c0_11] : memref<1x256xf32, #tpu.memory_space<vmem>>, vector<1x256xf32>
    %14 = vector.broadcast %13 : vector<1x256xf32> to vector<8x256xf32>
    %15 = arith.mulf %12, %14 : vector<8x256xf32>
    %cst_12 = arith.constant dense<0.000000e+00> : vector<8xf32>
    %16 = vector.multi_reduction <add>, %15, %cst_12 [1] : vector<8x256xf32> to vector<8xf32>
    %17 = vector.shape_cast %16 : vector<8xf32> to vector<8x1xf32>
    %c0_13 = arith.constant 0 : index
    %c0_14 = arith.constant 0 : index
    %18 = vector.load %arg7[%c0_13, %c0_14] : memref<1x128xf32, #tpu.memory_space<vmem>>, vector<1x128xf32>
    %19 = vector.broadcast %17 : vector<8x1xf32> to vector<8x128xf32>
    %20 = vector.broadcast %18 : vector<1x128xf32> to vector<8x128xf32>
    %21 = arith.addf %19, %20 : vector<8x128xf32>
    %c0_15 = arith.constant 0 : index
    %c0_16 = arith.constant 0 : index
    %22 = vector.load %arg8[%c0_15, %c0_16] : memref<8x128xf32, #tpu.memory_space<vmem>>, vector<8x128xf32>
    tpu.vector_store %arg8[%c0_15, %c0_16], %21 {strides = array<i32>} : memref<8x128xf32, #tpu.memory_space<vmem>>, vector<8x128xf32>,
    %23 = vector.extract_strided_slice %12 {offsets = [0, 128], sizes = [8, 128], strides = [1, 1]} : vector<8x256xf32> to vector<8x128xf32>
    %c0_17 = arith.constant 0 : index
    %c0_18 = arith.constant 0 : index
    %24 = vector.load %arg9[%c0_17, %c0_18] : memref<8x128xf32, #tpu.memory_space<vmem>>, vector<8x128xf32>
    tpu.vector_store %arg9[%c0_17, %c0_18], %23 {strides = array<i32>} : memref<8x128xf32, #tpu.memory_space<vmem>>, vector<8x128xf32>,
    return
  }
  func.func @transform_0(%arg0: i32) -> (i32, i32) {
    %c0_i32 = arith.constant 0 : i32
    %c0_i32_0 = arith.constant 0 : i32
    return %arg0, %c0_i32 : i32, i32
  }
  func.func @transform_1(%arg0: i32) -> (i32, i32) {
    %c0_i32 = arith.constant 0 : i32
    %c0_i32_0 = arith.constant 0 : i32
    %c0_i32_1 = arith.constant 0 : i32
    return %c0_i32, %c0_i32_0 : i32, i32
  }
  func.func @transform_2(%arg0: i32) -> (i32, i32) {
    %c0_i32 = arith.constant 0 : i32
    %c0_i32_0 = arith.constant 0 : i32
    %c0_i32_1 = arith.constant 0 : i32
    return %c0_i32, %c0_i32_0 : i32, i32
  }
  func.func @transform_3(%arg0: i32) -> (i32, i32) {
    %c0_i32 = arith.constant 0 : i32
    %c0_i32_0 = arith.constant 0 : i32
    %c0_i32_1 = arith.constant 0 : i32
    return %c0_i32, %c0_i32_0 : i32, i32
  }
  func.func @transform_4(%arg0: i32) -> (i32, i32) {
    %c0_i32 = arith.constant 0 : i32
    %c0_i32_0 = arith.constant 0 : i32
    %c0_i32_1 = arith.constant 0 : i32
    return %c0_i32, %c0_i32_0 : i32, i32
  }
  func.func @transform_5(%arg0: i32) -> (i32, i32) {
    %c0_i32 = arith.constant 0 : i32
    %c0_i32_0 = arith.constant 0 : i32
    %c0_i32_1 = arith.constant 0 : i32
    return %c0_i32, %c0_i32_0 : i32, i32
  }
  func.func @transform_6(%arg0: i32) -> (i32, i32) {
    %c0_i32 = arith.constant 0 : i32
    %c0_i32_0 = arith.constant 0 : i32
    %c0_i32_1 = arith.constant 0 : i32
    return %c0_i32, %c0_i32_0 : i32, i32
  }
  func.func @transform_7(%arg0: i32) -> (i32, i32) {
    %c0_i32 = arith.constant 0 : i32
    %c0_i32_0 = arith.constant 0 : i32
    return %arg0, %c0_i32 : i32, i32
  }
  func.func @transform_8(%arg0: i32) -> (i32, i32) {
    %c0_i32 = arith.constant 0 : i32
    %c0_i32_0 = arith.constant 0 : i32
    return %arg0, %c0_i32 : i32, i32
  }
}

</mosaic_0001>

<llo_original>
// kernel: actor_critic_forward.1
$region0: #{actor_critic_forward.1}
  #allocation0 [shape = 'u32[]', space=smem, size = 0x4, offset = 0x4, fixed_abs, tag = 'smem constant byte address 0x4 - core index']
  #allocation1 [shape = 'u32[72,128]{1,0:T(1,128)}', space=vmem, size = 0x9000, scoped, tag = 'internal scratch']
  %s0 = inlined_call_operand.hbm [shape: f32[8,16], index: 0, kind: input, shape index: {}]
  %s1 = inlined_call_operand.hbm [shape: f32[16,256], index: 1, kind: input, shape index: {}]
  %s2 = inlined_call_operand.hbm [shape: f32[1,256], index: 2, kind: input, shape index: {}]
  %s3 = inlined_call_operand.hbm [shape: f32[256,256], index: 3, kind: input, shape index: {}]
  %s4 = inlined_call_operand.hbm [shape: f32[1,256], index: 4, kind: input, shape index: {}]
  %s5 = inlined_call_operand.vmem [shape: f32[1,256], index: 5, kind: input, shape index: {}]
  %s6 = inlined_call_operand.vmem [shape: f32[1,128], index: 6, kind: input, shape index: {}]
  %s7 = inlined_call_operand.vmem [shape: f32[8,128], index: 7, kind: output, shape index: {0}]
  %s8 = inlined_call_operand.hbm [shape: f32[8,128], index: 8, kind: output, shape index: {1}]
  %9 = xla_tuple %s7, %s8
  %s10 = sld [smem:[#allocation0]]
  $region66: #{actor_critic_forward.1} parent=0
    _
  %s12 = ssub.s32 1, %s10
  %s13 = scalar_select 0, %s12, %s10
  $region1: #{actor_critic_forward.1} parent=0
    #allocation2 [shape = 'u8[4096]{0}', space=vmem, size = 0x1000, scoped, tag = 'input window, operand 0, single buffered']
    #allocation3 [shape = 's32[1]{0}', space=sflag, size = 0x4, scoped, tag = 'scoped memory for actor_critic_forward.1']
    #allocation4 [shape = 's32[1]{0}', space=sflag, size = 0x4, scoped, tag = 'scoped memory for actor_critic_forward.1']
    #allocation5 [shape = 'u8[16384]{0}', space=vmem, size = 0x4000, scoped, tag = 'input window, operand 1, single buffered']
    #allocation6 [shape = 's32[1]{0}', space=sflag, size = 0x4, scoped, tag = 'scoped memory for actor_critic_forward.1']
    #allocation7 [shape = 'u8[1024]{0}', space=vmem, size = 0x400, scoped, tag = 'input window, operand 2, single buffered']
    #allocation8 [shape = 'u8[262144]{0}', space=vmem, size = 0x40000, scoped, tag = 'input window, operand 3, single buffered']
    #allocation9 [shape = 's32[1]{0}', space=sflag, size = 0x4, scoped, tag = 'scoped memory for actor_critic_forward.1']
    #allocation10 [shape = 'u8[1024]{0}', space=vmem, size = 0x400, scoped, tag = 'input window, operand 4, single buffered']
    #allocation11 [shape = 'u8[4096]{0}', space=vmem, size = 0x1000, scoped, tag = 'output window, operand 1, single buffered']
    %14 = vsyncpa [#allocation3], 0
    %15 = vsyncpa [#allocation6], 0
    %16 = vsyncpa [#allocation9], 0
    %17 = vsyncpa [#allocation4], 0
    // Predicated region
    $region2: #{actor_critic_forward.1} parent=1 // pred_check
      _
    $region3: #{actor_critic_forward.1} parent=1 // pred_check_branch
      %19 = sbr.rel (0) target = $region5
    $region4: #{actor_critic_forward.1} parent=1 // pred_region
      %21 = vsyncadd [#allocation3], 0
      %s23 = sshll.u32 %s0, 4
      %s24 = int_to_ptr.hbm [resolvable:$true] %s23
      %s25 = sshll.u32 [#allocation2], 4
      %s26 = int_to_ptr.vmem [resolvable:$true] %s25
      %28 = dma.hbm_to_vmem [thread:$0]  %s24, 128, %s26, [#allocation3]
    $region5: #{actor_critic_forward.1} parent=1 // pred_fallthru
      _
    // Predicated region
    $region6: #{actor_critic_forward.1} parent=1 // pred_check
      _
    $region7: #{actor_critic_forward.1} parent=1 // pred_check_branch
      %30 = sbr.rel (0) target = $region9
    $region8: #{actor_critic_forward.1} parent=1 // pred_region
      %32 = vsyncadd [#allocation6], 0
      %s33 = sshll.u32 %s1, 4
      %s34 = int_to_ptr.hbm [resolvable:$true] %s33
      %s35 = sshll.u32 [#allocation5], 4
      %s36 = int_to_ptr.vmem [resolvable:$true] %s35
      %41 = dma.hbm_to_vmem [thread:$0]  %s34, 512, %s36, [#allocation6], 256, 256, 16
    $region9: #{actor_critic_forward.1} parent=1 // pred_fallthru
      _
    // Predicated region
    $region10: #{actor_critic_forward.1} parent=1 // pred_check
      _
    $region11: #{actor_critic_forward.1} parent=1 // pred_check_branch
      %43 = sbr.rel (0) target = $region13
    $region12: #{actor_critic_forward.1} parent=1 // pred_region
      %45 = vsyncadd [#allocation6], 0
      %s47 = sshll.u32 %s2, 4
      %s48 = int_to_ptr.hbm [resolvable:$true] %s47
      %s49 = sshll.u32 [#allocation7], 4
      %s50 = int_to_ptr.vmem [resolvable:$true] %s49
      %52 = dma.hbm_to_vmem [thread:$0]  %s48, 32, %s50, [#allocation6]
    $region13: #{actor_critic_forward.1} parent=1 // pred_fallthru
      _
    // Predicated region
    $region14: #{actor_critic_forward.1} parent=1 // pred_check
      _
    $region15: #{actor_critic_forward.1} parent=1 // pred_check_branch
      %54 = sbr.rel (0) target = $region17
    $region16: #{actor_critic_forward.1} parent=1 // pred_region
      %56 = vsyncadd [#allocation9], 0
      %s57 = sshll.u32 %s3, 4
      %s58 = int_to_ptr.hbm [resolvable:$true] %s57
      %s59 = sshll.u32 [#allocation8], 4
      %s60 = int_to_ptr.vmem [resolvable:$true] %s59
      %65 = dma.hbm_to_vmem [thread:$0]  %s58, 8192, %s60, [#allocation9], 256, 256, 16
    $region17: #{actor_critic_forward.1} parent=1 // pred_fallthru
      _
    // Predicated region
    $region18: #{actor_critic_forward.1} parent=1 // pred_check
      _
    $region19: #{actor_critic_forward.1} parent=1 // pred_check_branch
      %67 = sbr.rel (0) target = $region21
    $region20: #{actor_critic_forward.1} parent=1 // pred_region
      %69 = vsyncadd [#allocation9], 0
      %s71 = sshll.u32 %s4, 4
      %s72 = int_to_ptr.hbm [resolvable:$true] %s71
      %s73 = sshll.u32 [#allocation10], 4
      %s74 = int_to_ptr.vmem [resolvable:$true] %s73
      %76 = dma.hbm_to_vmem [thread:$0]  %s72, 32, %s74, [#allocation9]
    $region21: #{actor_critic_forward.1} parent=1 // pred_fallthru
      _
    // Predicated region
    $region22: #{actor_critic_forward.1} parent=1 // pred_check
      _
    $region23: #{actor_critic_forward.1} parent=1 // pred_check_branch
      %78 = sbr.rel (0) target = $region25
    $region24: #{actor_critic_forward.1} parent=1 // pred_region
      _
    $region25: #{actor_critic_forward.1} parent=1 // pred_fallthru
      _
    // Predicated region
    $region26: #{actor_critic_forward.1} parent=1 // pred_check
      _
    $region27: #{actor_critic_forward.1} parent=1 // pred_check_branch
      %80 = sbr.rel (0) target = $region29
    $region28: #{actor_critic_forward.1} parent=1 // pred_region
      _
    $region29: #{actor_critic_forward.1} parent=1 // pred_fallthru
      _
    // Predicated region
    $region30: #{actor_critic_forward.1} parent=1 // pred_check
      _
    $region31: #{actor_critic_forward.1} parent=1 // pred_check_branch
      %82 = sbr.rel (0) target = $region33
    $region32: #{actor_critic_forward.1} parent=1 // pred_region
      %84 = dma.done [#allocation3], 128
    $region33: #{actor_critic_forward.1} parent=1 // pred_fallthru
      _
    // Predicated region
    $region34: #{actor_critic_forward.1} parent=1 // pred_check
      _
    $region35: #{actor_critic_forward.1} parent=1 // pred_check_branch
      %86 = sbr.rel (0) target = $region37
    $region36: #{actor_critic_forward.1} parent=1 // pred_region
      %88 = dma.done [#allocation6], 512
    $region37: #{actor_critic_forward.1} parent=1 // pred_fallthru
      _
    // Predicated region
    $region38: #{actor_critic_forward.1} parent=1 // pred_check
      _
    $region39: #{actor_critic_forward.1} parent=1 // pred_check_branch
      %90 = sbr.rel (0) target = $region41
    $region40: #{actor_critic_forward.1} parent=1 // pred_region
      %92 = dma.done [#allocation6], 32
    $region41: #{actor_critic_forward.1} parent=1 // pred_fallthru
      _
    // Predicated region
    $region42: #{actor_critic_forward.1} parent=1 // pred_check
      _
    $region43: #{actor_critic_forward.1} parent=1 // pred_check_branch
      %94 = sbr.rel (0) target = $region45
    $region44: #{actor_critic_forward.1} parent=1 // pred_region
      %96 = dma.done [#allocation9], 8192
    $region45: #{actor_critic_forward.1} parent=1 // pred_fallthru
      _
    // Predicated region
    $region46: #{actor_critic_forward.1} parent=1 // pred_check
      _
    $region47: #{actor_critic_forward.1} parent=1 // pred_check_branch
      %98 = sbr.rel (0) target = $region49
    $region48: #{actor_critic_forward.1} parent=1 // pred_region
      %100 = dma.done [#allocation9], 32
    $region49: #{actor_critic_forward.1} parent=1 // pred_fallthru
      _
    %v101 = vld [vmem:[#allocation2] sm:$0xff]
    %v102 = vld [vmem:[#allocation5] sm:$0xff]
    %v103 = vld [vmem:[#allocation5 + $0x8] sm:$0xff]
    %v104 = vld [vmem:[#allocation5 + $0x10] sm:$0xff]
    %v105 = vld [vmem:[#allocation5 + $0x18] sm:$0xff]
    %v106 = vld [vmem:[#allocation7] sm:$0x3]
    %v108 = vperm.slane %v106, 0
    %v109 = vperm.slane %v106, 1
    %vm112 = vcmask 130048
    %v114 = vsel %vm112, %v101, 0
    %116 = vmatpush.msra.mxu0 0.0
    %117 = vmatpush.msra.mxu0 0.0
    %118 = vmatpush.msra.mxu0 0.0
    %119 = vmatpush.msra.mxu0 0.0
    %120 = vmatpush.msra.mxu0 0.0
    %121 = vmatpush.msra.mxu0 0.0
    %122 = vmatpush.msra.mxu0 0.0
    %123 = vmatpush.msra.mxu0 0.0
    %124 = vmatpush.msra.mxu0 0.0
    %125 = vmatpush.msra.mxu0 0.0
    %126 = vmatpush.msra.mxu0 0.0
    %127 = vmatpush.msra.mxu0 0.0
    %128 = vmatpush.msra.mxu0 0.0
    %129 = vmatpush.msra.mxu0 0.0
    %130 = vmatpush.msra.mxu0 %v104
    %131 = vmatpush.msra.mxu0 %v102
    %132 = vmatmul.f32.gmra.mxu0 %v114
    %v133 = vpop.f32.mrf.mxu0
    %v134 = vadd.f32 %v108, %v133
    %135 = vdwg.mxu0
    %136 = vmatpush.msra.mxu0 0.0
    %137 = vmatpush.msra.mxu0 0.0
    %138 = vmatpush.msra.mxu0 0.0
    %139 = vmatpush.msra.mxu0 0.0
    %140 = vmatpush.msra.mxu0 0.0
    %141 = vmatpush.msra.mxu0 0.0
    %142 = vmatpush.msra.mxu0 0.0
    %143 = vmatpush.msra.mxu0 0.0
    %144 = vmatpush.msra.mxu0 0.0
    %145 = vmatpush.msra.mxu0 0.0
    %146 = vmatpush.msra.mxu0 0.0
    %147 = vmatpush.msra.mxu0 0.0
    %148 = vmatpush.msra.mxu0 0.0
    %149 = vmatpush.msra.mxu0 0.0
    %150 = vmatpush.msra.mxu0 %v105
    %151 = vmatpush.msra.mxu0 %v103
    %152 = vmatmul.f32.gmra.mxu0 %v114
    %v153 = vpop.f32.mrf.mxu0
    %v154 = vadd.f32 %v109, %v153
    %155 = vdwg.mxu0
    %v156 = vtanh.pop %v134
    %v157 = vtanh.pop %v154
    %v158 = vld [vmem:[#allocation8] sm:$0xff]
    %v159 = vld [vmem:[#allocation8 + $0x8] sm:$0xff]
    %v160 = vld [vmem:[#allocation8 + $0x10] sm:$0xff]
    %v161 = vld [vmem:[#allocation8 + $0x18] sm:$0xff]
    %v162 = vld [vmem:[#allocation8 + $0x20] sm:$0xff]
    %v163 = vld [vmem:[#allocation8 + $0x28] sm:$0xff]
    %v164 = vld [vmem:[#allocation8 + $0x30] sm:$0xff]
    %v165 = vld [vmem:[#allocation8 + $0x38] sm:$0xff]
    %v166 = vld [vmem:[#allocation8 + $0x40] sm:$0xff]
    %v167 = vld [vmem:[#allocation8 + $0x48] sm:$0xff]
    %v168 = vld [vmem:[#allocation8 + $0x50] sm:$0xff]
    %v169 = vld [vmem:[#allocation8 + $0x58] sm:$0xff]
    %v170 = vld [vmem:[#allocation8 + $0x60] sm:$0xff]
    %v171 = vld [vmem:[#allocation8 + $0x68] sm:$0xff]
    %v172 = vld [vmem:[#allocation8 + $0x70] sm:$0xff]
    %v173 = vld [vmem:[#allocation8 + $0x78] sm:$0xff]
    %v174 = vld [vmem:[#allocation8 + $0x80] sm:$0xff]
    %v175 = vld [vmem:[#allocation8 + $0x88] sm:$0xff]
    %v176 = vld [vmem:[#allocation8 + $0x90] sm:$0xff]
    %v177 = vld [vmem:[#allocation8 + $0x98] sm:$0xff]
    %v178 = vld [vmem:[#allocation8 + $0xa0] sm:$0xff]
    %v179 = vld [vmem:[#allocation8 + $0xa8] sm:$0xff]
    %v180 = vld [vmem:[#allocation8 + $0xb0] sm:$0xff]
    %v181 = vld [vmem:[#allocation8 + $0xb8] sm:$0xff]
    %v182 = vld [vmem:[#allocation8 + $0xc0] sm:$0xff]
    %v183 = vld [vmem:[#allocation8 + $0xc8] sm:$0xff]
    %v184 = vld [vmem:[#allocation8 + $0xd0] sm:$0xff]
    %v185 = vld [vmem:[#allocation8 + $0xd8] sm:$0xff]
    %v186 = vld [vmem:[#allocation8 + $0xe0] sm:$0xff]
    %v187 = vld [vmem:[#allocation8 + $0xe8] sm:$0xff]
    %v188 = vld [vmem:[#allocation8 + $0xf0] sm:$0xff]
    %v189 = vld [vmem:[#allocation8 + $0xf8] sm:$0xff]
    %v190 = vld [vmem:[#allocation8 + $0x100] sm:$0xff]
    %v191 = vld [vmem:[#allocation8 + $0x108] sm:$0xff]
    %v192 = vld [vmem:[#allocation8 + $0x110] sm:$0xff]
    %v193 = vld [vmem:[#allocation8 + $0x118] sm:$0xff]
    %v194 = vld [vmem:[#allocation8 + $0x120] sm:$0xff]
    %v195 = vld [vmem:[#allocation8 + $0x128] sm:$0xff]
    %v196 = vld [vmem:[#allocation8 + $0x130] sm:$0xff]
    %v197 = vld [vmem:[#allocation8 + $0x138] sm:$0xff]
    %v198 = vld [vmem:[#allocation8 + $0x140] sm:$0xff]
    %v199 = vld [vmem:[#allocation8 + $0x148] sm:$0xff]
    %v200 = vld [vmem:[#allocation8 + $0x150] sm:$0xff]
    %v201 = vld [vmem:[#allocation8 + $0x158] sm:$0xff]
    %v202 = vld [vmem:[#allocation8 + $0x160] sm:$0xff]
    %v203 = vld [vmem:[#allocation8 + $0x168] sm:$0xff]
    %v204 = vld [vmem:[#allocation8 + $0x170] sm:$0xff]
    %v205 = vld [vmem:[#allocation8 + $0x178] sm:$0xff]
    %v206 = vld [vmem:[#allocation8 + $0x180] sm:$0xff]
    %v207 = vld [vmem:[#allocation8 + $0x188] sm:$0xff]
    %v208 = vld [vmem:[#allocation8 + $0x190] sm:$0xff]
    %v209 = vld [vmem:[#allocation8 + $0x198] sm:$0xff]
    %v210 = vld [vmem:[#allocation8 + $0x1a0] sm:$0xff]
    %v211 = vld [vmem:[#allocation8 + $0x1a8] sm:$0xff]
    %v212 = vld [vmem:[#allocation8 + $0x1b0] sm:$0xff]
    %v213 = vld [vmem:[#allocation8 + $0x1b8] sm:$0xff]
    %v214 = vld [vmem:[#allocation8 + $0x1c0] sm:$0xff]
    %v215 = vld [vmem:[#allocation8 + $0x1c8] sm:$0xff]
    %v216 = vld [vmem:[#allocation8 + $0x1d0] sm:$0xff]
    %v217 = vld [vmem:[#allocation8 + $0x1d8] sm:$0xff]
    %v218 = vld [vmem:[#allocation8 + $0x1e0] sm:$0xff]
    %v219 = vld [vmem:[#allocation8 + $0x1e8] sm:$0xff]
    %v220 = vld [vmem:[#allocation8 + $0x1f0] sm:$0xff]
    %v221 = vld [vmem:[#allocation8 + $0x1f8] sm:$0xff]
    %v222 = vld [vmem:[#allocation10] sm:$0x3]
    %v224 = vperm.slane %v222, 0
    %v225 = vperm.slane %v222, 1
    %228 = vmatpush.msra.mxu0 %v188
    %229 = vmatpush.msra.mxu0 %v186
    %230 = vmatpush.msra.mxu0 %v184
    %231 = vmatpush.msra.mxu0 %v182
    %232 = vmatpush.msra.mxu0 %v180
    %233 = vmatpush.msra.mxu0 %v178
    %234 = vmatpush.msra.mxu0 %v176
    %235 = vmatpush.msra.mxu0 %v174
    %236 = vmatpush.msra.mxu0 %v172
    %237 = vmatpush.msra.mxu0 %v170
    %238 = vmatpush.msra.mxu0 %v168
    %239 = vmatpush.msra.mxu0 %v166
    %240 = vmatpush.msra.mxu0 %v164
    %241 = vmatpush.msra.mxu0 %v162
    %242 = vmatpush.msra.mxu0 %v160
    %243 = vmatpush.msra.mxu0 %v158
    %244 = vmatmul.f32.gmra.mxu0 %v156
    %v245 = vpop.f32.mrf.mxu0
    %v246 = vadd.f32 %v224, %v245
    %247 = vdwg.mxu0
    %248 = vmatpush.msra.mxu0 %v220
    %249 = vmatpush.msra.mxu0 %v218
    %250 = vmatpush.msra.mxu0 %v216
    %251 = vmatpush.msra.mxu0 %v214
    %252 = vmatpush.msra.mxu0 %v212
    %253 = vmatpush.msra.mxu0 %v210
    %254 = vmatpush.msra.mxu0 %v208
    %255 = vmatpush.msra.mxu0 %v206
    %256 = vmatpush.msra.mxu0 %v204
    %257 = vmatpush.msra.mxu0 %v202
    %258 = vmatpush.msra.mxu0 %v200
    %259 = vmatpush.msra.mxu0 %v198
    %260 = vmatpush.msra.mxu0 %v196
    %261 = vmatpush.msra.mxu0 %v194
    %262 = vmatpush.msra.mxu0 %v192
    %263 = vmatpush.msra.mxu0 %v190
    %264 = vmatmul.f32.gmra.mxu0 %v157
    %v265 = vpop.f32.mrf.mxu0
    %v266 = vadd.f32 %v246, %v265
    %267 = vdwg.mxu0
    %268 = vmatpush.msra.mxu0 %v189
    %269 = vmatpush.msra.mxu0 %v187
    %270 = vmatpush.msra.mxu0 %v185
    %271 = vmatpush.msra.mxu0 %v183
    %272 = vmatpush.msra.mxu0 %v181
    %273 = vmatpush.msra.mxu0 %v179
    %274 = vmatpush.msra.mxu0 %v177
    %275 = vmatpush.msra.mxu0 %v175
    %276 = vmatpush.msra.mxu0 %v173
    %277 = vmatpush.msra.mxu0 %v171
    %278 = vmatpush.msra.mxu0 %v169
    %279 = vmatpush.msra.mxu0 %v167
    %280 = vmatpush.msra.mxu0 %v165
    %281 = vmatpush.msra.mxu0 %v163
    %282 = vmatpush.msra.mxu0 %v161
    %283 = vmatpush.msra.mxu0 %v159
    %284 = vmatmul.f32.gmra.mxu0 %v156
    %v285 = vpop.f32.mrf.mxu0
    %v286 = vadd.f32 %v225, %v285
    %287 = vdwg.mxu0
    %288 = vmatpush.msra.mxu0 %v221
    %289 = vmatpush.msra.mxu0 %v219
    %290 = vmatpush.msra.mxu0 %v217
    %291 = vmatpush.msra.mxu0 %v215
    %292 = vmatpush.msra.mxu0 %v213
    %293 = vmatpush.msra.mxu0 %v211
    %294 = vmatpush.msra.mxu0 %v209
    %295 = vmatpush.msra.mxu0 %v207
    %296 = vmatpush.msra.mxu0 %v205
    %297 = vmatpush.msra.mxu0 %v203
    %298 = vmatpush.msra.mxu0 %v201
    %299 = vmatpush.msra.mxu0 %v199
    %300 = vmatpush.msra.mxu0 %v197
    %301 = vmatpush.msra.mxu0 %v195
    %302 = vmatpush.msra.mxu0 %v193
    %303 = vmatpush.msra.mxu0 %v191
    %304 = vmatmul.f32.gmra.mxu0 %v157
    %v305 = vpop.f32.mrf.mxu0
    %v306 = vadd.f32 %v286, %v305
    %307 = vdwg.mxu0
    %v308 = vtanh.pop %v266
    %v309 = vtanh.pop %v306
    %v310 = vld [vmem:[%s5] sm:$0x3]
    %v312 = vperm.slane %v310, 0
    %v313 = vperm.slane %v310, 1
    %v316 = vmul.f32 %v308, %v312
    %v317 = vmul.f32 %v309, %v313
    %v318 = vadd.f32 %v316, %v317
    %319 = vadd.xlane.f32.xlu0 %v318
    %v320 = vpop.xlane.xlu0 %319
    %v321 = vld [vmem:[%s6] sm:$0x1]
    %v323 = vperm.slane %v321, 0
    %v325 = vadd.f32 %v320, %v323
    %326 = vst [vmem:[%s7] sm:$0xff] %v325
    %327 = vst [vmem:[#allocation11] sm:$0xff] %v309
    // Predicated region
    $region50: #{actor_critic_forward.1} parent=1 // pred_check
      _
    $region51: #{actor_critic_forward.1} parent=1 // pred_check_branch
      %329 = sbr.rel (0) target = $region53
    $region52: #{actor_critic_forward.1} parent=1 // pred_region
      _
    $region53: #{actor_critic_forward.1} parent=1 // pred_fallthru
      _
    // Predicated region
    $region54: #{actor_critic_forward.1} parent=1 // pred_check
      _
    $region55: #{actor_critic_forward.1} parent=1 // pred_check_branch
      %331 = sbr.rel (0) target = $region57
    $region56: #{actor_critic_forward.1} parent=1 // pred_region
      %333 = vsyncadd [#allocation4], 0
      %s335 = sshll.u32 [#allocation11], 4
      %s336 = int_to_ptr.vmem [resolvable:$true] %s335
      %s337 = sshll.u32 %s8, 4
      %s338 = int_to_ptr.hbm [resolvable:$true] %s337
      %340 = dma.vmem_to_hbm [thread:$0]  %s336, 128, %s338, [#allocation4]
    $region57: #{actor_critic_forward.1} parent=1 // pred_fallthru
      _
    // Predicated region
    $region58: #{actor_critic_forward.1} parent=1 // pred_check
      _
    $region59: #{actor_critic_forward.1} parent=1 // pred_check_branch
      %342 = sbr.rel (0) target = $region61
    $region60: #{actor_critic_forward.1} parent=1 // pred_region
      _
    $region61: #{actor_critic_forward.1} parent=1 // pred_fallthru
      _
    // Predicated region
    $region62: #{actor_critic_forward.1} parent=1 // pred_check
      _
    $region63: #{actor_critic_forward.1} parent=1 // pred_check_branch
      %344 = sbr.rel (0) target = $region65
    $region64: #{actor_critic_forward.1} parent=1 // pred_region
      %346 = dma.done [#allocation4], 128
    $region65: #{actor_critic_forward.1} parent=1 // pred_fallthru
      _
    %347 = vsyncpa [#allocation3], 1
    %348 = vsyncpa [#allocation6], 1
    %349 = vsyncpa [#allocation9], 1
    %350 = vsyncpa [#allocation4], 1

</llo_original>
